<compile_context>
chip_gen: v6e
topology: v6e:2x2x1
jax: 0.10.0
libtpu: 0.0.40
codegen_flags: <defaults>
</compile_context>

<pallas_src>
import jax
import jax.numpy as jnp
from jax.experimental import pallas as pl
from jax.experimental.pallas import tpu as pltpu

BOARD = 9
HW = BOARD * BOARD            # 81
OUT_CH = 2
FC_IN = OUT_CH * HW           # 162
FC_OUT = HW + 1               # 82
FC_OUT_PAD = 128              # lane-dense output slab
BN_EPS = 1e-5


def _policy_head_kernel(x_ref, w_ref, b_ref, wfc_ref, bfc_ref, o_ref):
    # x_ref  : (C, tn, 81)   VMEM  -- batch tile, channel-major
    # w_ref  : (OUT_CH, C)   SMEM  -- BN-folded 1x1 conv weights
    # b_ref  : (OUT_CH,)     SMEM  -- BN-folded conv bias
    # wfc_ref: (OUT_CH, 81, 128) VMEM -- fc weight, channel-major, lane-padded
    # bfc_ref: (1, 128)      VMEM
    # o_ref  : (tn, 128)     VMEM
    n_in = x_ref.shape[0]
    n_out = wfc_ref.shape[0]

    out = None
    for o in range(n_out):
        # 1x1 conv on the VPU: scalar-broadcast FMAs over the (tn, 81) tile.
        acc = x_ref[0] * w_ref[o, 0]
        for c in range(1, n_in):
            acc = acc + x_ref[c] * w_ref[o, c]
        y = jnp.maximum(acc + b_ref[o], 0.0)                 # ReLU
        # FC (channel-major flatten): accumulate per-channel (tn,81)@(81,128).
        d = jnp.dot(y, wfc_ref[o], preferred_element_type=jnp.float32)
        out = d if out is None else out + d

    out = out + bfc_ref[...]
    o_ref[...] = out.astype(o_ref.dtype)


def policy_head_forward(x_nchw, params, *, tn=256):
    N, C, H, W = x_nchw.shape
    assert H == BOARD and W == BOARD, "PolicyHead expects 9x9 spatial input"

    # --- batch tiling: tn rows per grid step, batch padded to a multiple of tn.
    tn = max(8, min(tn, ((N + 7) // 8) * 8))
    n_pad = ((N + tn - 1) // tn) * tn
    grid = (n_pad // tn,)

    x = x_nchw.reshape(N, C, HW)
    if n_pad != N:
        x = jnp.pad(x, ((0, n_pad - N), (0, 0), (0, 0)))
    # (C, N, 81): batch on sublanes inside each tile.
    x_t = jnp.transpose(x, (1, 0, 2))

    # --- fold BatchNorm (inference running stats) + conv bias into the conv (f32).
    wc = params["conv_w"].astype(jnp.float32).reshape(OUT_CH, C)
    bc = params["conv_b"].astype(jnp.float32)
    gamma = params["bn_gamma"].astype(jnp.float32)
    beta = params["bn_beta"].astype(jnp.float32)
    mean = params["bn_mean"].astype(jnp.float32)
    var = params["bn_var"].astype(jnp.float32)
    scale = gamma / jnp.sqrt(var + BN_EPS)
    w_fold = scale[:, None] * wc                              # (OUT_CH, C)
    b_fold = scale * (bc - mean) + beta                       # (OUT_CH,)

    # --- fc weight: torch Linear is (out, in) with `in` flattened channel-major.
    # fc_w[k, o*81 + hw] -> wfc[o, hw, k], lane-padded 82 -> 128.
    wfc = params["fc_w"].astype(jnp.float32).reshape(FC_OUT, OUT_CH, HW)
    wfc = jnp.transpose(wfc, (1, 2, 0))                       # (OUT_CH, 81, 82)
    wfc = jnp.pad(wfc, ((0, 0), (0, 0), (0, FC_OUT_PAD - FC_OUT)))
    bfc = jnp.pad(params["fc_b"].astype(jnp.float32).reshape(1, FC_OUT),
                  ((0, 0), (0, FC_OUT_PAD - FC_OUT)))

    out = pl.pallas_call(
        _policy_head_kernel,
        out_shape=jax.ShapeDtypeStruct((n_pad, FC_OUT_PAD), x_nchw.dtype),
        grid_spec=pltpu.PrefetchScalarGridSpec(
            num_scalar_prefetch=0,
            grid=grid,
            in_specs=[
                pl.BlockSpec((C, tn, HW), lambda i: (0, i, 0)),            # x
                pl.BlockSpec(memory_space=pltpu.MemorySpace.SMEM),          # folded conv w
                pl.BlockSpec(memory_space=pltpu.MemorySpace.SMEM),          # folded conv b
                pl.BlockSpec((OUT_CH, HW, FC_OUT_PAD), lambda i: (0, 0, 0)),  # fc w
                pl.BlockSpec((1, FC_OUT_PAD), lambda i: (0, 0)),            # fc b
            ],
            out_specs=pl.BlockSpec((tn, FC_OUT_PAD), lambda i: (i, 0)),
        ),
        compiler_params=pltpu.CompilerParams(
            dimension_semantics=("parallel",)),
    )(x_t, w_fold, b_fold, wfc, bfc)

    return out[:N, :FC_OUT]


def policy_head_ref(x, params):
    # Pure-JAX reference with identical semantics (for correctness check).
    N, C, H, W = x.shape
    wc = params["conv_w"].reshape(OUT_CH, C)
    z = jnp.einsum("oc,nchw->nohw", wc, x) + params["conv_b"].reshape(1, OUT_CH, 1, 1)
    scale = params["bn_gamma"] / jnp.sqrt(params["bn_var"] + BN_EPS)
    y = (z - params["bn_mean"].reshape(1, OUT_CH, 1, 1)) * scale.reshape(1, OUT_CH, 1, 1)
    y = y + params["bn_beta"].reshape(1, OUT_CH, 1, 1)
    y = jnp.maximum(y, 0.0)
    yf = y.reshape(N, FC_IN)                                  # channel-major flatten
    return yf @ params["fc_w"].T + params["fc_b"]


if __name__ == "__main__":
    key = jax.random.PRNGKey(0)
    ks = jax.random.split(key, 10)
    N, C = 2, 4                                               # in_channels = 4
    x = jax.random.normal(ks[0], (N, C, BOARD, BOARD), jnp.float32)

    params = {
        "conv_w": 0.1 * jax.random.normal(ks[1], (OUT_CH, C, 1, 1), jnp.float32),
        "conv_b": 0.1 * jax.random.normal(ks[2], (OUT_CH,), jnp.float32),
        "bn_gamma": 1.0 + 0.1 * jax.random.normal(ks[3], (OUT_CH,), jnp.float32),
        "bn_beta": 0.1 * jax.random.normal(ks[4], (OUT_CH,), jnp.float32),
        "bn_mean": 0.1 * jax.random.normal(ks[5], (OUT_CH,), jnp.float32),
        "bn_var": 1.0 + 0.1 * jax.random.uniform(ks[6], (OUT_CH,), jnp.float32),
        "fc_w": 0.05 * jax.random.normal(ks[7], (FC_OUT, FC_IN), jnp.float32),
        "fc_b": 0.05 * jax.random.normal(ks[8], (FC_OUT,), jnp.float32),
    }

    out = policy_head_forward(x, params)
    out = jax.block_until_ready(out)
    ref = policy_head_ref(x, params)
    assert out.shape == (N, FC_OUT)
    assert jnp.allclose(out, ref, rtol=1e-4, atol=1e-4), "mismatch vs reference"

    # Exercise the multi-tile / batch-padding path as well.
    N2 = 19
    x2 = jax.random.normal(ks[9], (N2, C, BOARD, BOARD), jnp.float32)
    out2 = jax.block_until_ready(policy_head_forward(x2, params, tn=8))
    ref2 = policy_head_ref(x2, params)
    assert out2.shape == (N2, FC_OUT)
    assert jnp.allclose(out2, ref2, rtol=1e-4, atol=1e-4), "mismatch vs reference (tiled)"

    print("KERNEL_OK")
</pallas_src>

<mosaic_0001>
module attributes {stable_mosaic.version = 11 : i64} {
  func.func @_policy_head_kernel(%arg0: i32, %arg1: memref<4x8x81xf32, #tpu.memory_space<vmem>>, %arg2: memref<2x4xf32, #tpu.memory_space<smem>>, %arg3: memref<2xf32, #tpu.memory_space<smem>>, %arg4: memref<2x81x128xf32, #tpu.memory_space<vmem>>, %arg5: memref<1x128xf32, #tpu.memory_space<vmem>>, %arg6: memref<8x128xf32, #tpu.memory_space<vmem>>) attributes {dimension_semantics = [#tpu.dimension_semantics<parallel>], iteration_bounds = array<i64: 1>, scalar_prefetch = 0 : i64, scratch_operands = 0 : i64, tpu.core_type = #tpu.core_type<tc>, window_params = [{transform_indices = @transform_0, window_bounds = array<i64: 4, 8, 81>}, {transform_indices = @transform_1, window_bounds = array<i64: 2, 4>}, {transform_indices = @transform_2, window_bounds = array<i64: 2>}, {pipeline_mode = #tpu.pipeline_mode<synchronous>, transform_indices = @transform_3, window_bounds = array<i64: 2, 81, 128>}, {pipeline_mode = #tpu.pipeline_mode<synchronous>, transform_indices = @transform_4, window_bounds = array<i64: 1, 128>}, {transform_indices = @transform_5, window_bounds = array<i64: 8, 128>}]} {
    %c0 = arith.constant 0 : index
    %c0_0 = arith.constant 0 : index
    %c0_1 = arith.constant 0 : index
    %0 = vector.load %arg1[%c0, %c0_0, %c0_1] : memref<4x8x81xf32, #tpu.memory_space<vmem>>, vector<1x8x81xf32>
    %1 = vector.shape_cast %0 : vector<1x8x81xf32> to vector<8x81xf32>
    %c0_2 = arith.constant 0 : index
    %c0_3 = arith.constant 0 : index
    %2 = memref.load %arg2[%c0_2, %c0_3] : memref<2x4xf32, #tpu.memory_space<smem>>
    %3 = vector.broadcast %2 : f32 to vector<8x81xf32>
    %4 = arith.mulf %1, %3 : vector<8x81xf32>
    %c1 = arith.constant 1 : index
    %c0_4 = arith.constant 0 : index
    %c0_5 = arith.constant 0 : index
    %5 = vector.load %arg1[%c1, %c0_4, %c0_5] : memref<4x8x81xf32, #tpu.memory_space<vmem>>, vector<1x8x81xf32>
    %6 = vector.shape_cast %5 : vector<1x8x81xf32> to vector<8x81xf32>
    %c0_6 = arith.constant 0 : index
    %c1_7 = arith.constant 1 : index
    %7 = memref.load %arg2[%c0_6, %c1_7] : memref<2x4xf32, #tpu.memory_space<smem>>
    %8 = vector.broadcast %7 : f32 to vector<8x81xf32>
    %9 = arith.mulf %6, %8 : vector<8x81xf32>
    %10 = arith.addf %4, %9 : vector<8x81xf32>
    %c2 = arith.constant 2 : index
    %c0_8 = arith.constant 0 : index
    %c0_9 = arith.constant 0 : index
    %11 = vector.load %arg1[%c2, %c0_8, %c0_9] : memref<4x8x81xf32, #tpu.memory_space<vmem>>, vector<1x8x81xf32>
    %12 = vector.shape_cast %11 : vector<1x8x81xf32> to vector<8x81xf32>
    %c0_10 = arith.constant 0 : index
    %c2_11 = arith.constant 2 : index
    %13 = memref.load %arg2[%c0_10, %c2_11] : memref<2x4xf32, #tpu.memory_space<smem>>
    %14 = vector.broadcast %13 : f32 to vector<8x81xf32>
    %15 = arith.mulf %12, %14 : vector<8x81xf32>
    %16 = arith.addf %10, %15 : vector<8x81xf32>
    %c3 = arith.constant 3 : index
    %c0_12 = arith.constant 0 : index
    %c0_13 = arith.constant 0 : index
    %17 = vector.load %arg1[%c3, %c0_12, %c0_13] : memref<4x8x81xf32, #tpu.memory_space<vmem>>, vector<1x8x81xf32>
    %18 = vector.shape_cast %17 : vector<1x8x81xf32> to vector<8x81xf32>
    %c0_14 = arith.constant 0 : index
    %c3_15 = arith.constant 3 : index
    %19 = memref.load %arg2[%c0_14, %c3_15] : memref<2x4xf32, #tpu.memory_space<smem>>
    %20 = vector.broadcast %19 : f32 to vector<8x81xf32>
    %21 = arith.mulf %18, %20 : vector<8x81xf32>
    %22 = arith.addf %16, %21 : vector<8x81xf32>
    %c0_16 = arith.constant 0 : index
    %23 = memref.load %arg3[%c0_16] : memref<2xf32, #tpu.memory_space<smem>>
    %24 = vector.broadcast %23 : f32 to vector<8x81xf32>
    %25 = arith.addf %22, %24 : vector<8x81xf32>
    %cst = arith.constant 0.000000e+00 : f32
    %26 = vector.broadcast %cst : f32 to vector<8x81xf32>
    %27 = arith.maximumf %25, %26 : vector<8x81xf32>
    %c0_17 = arith.constant 0 : index
    %c0_18 = arith.constant 0 : index
    %c0_19 = arith.constant 0 : index
    %28 = vector.load %arg4[%c0_17, %c0_18, %c0_19] : memref<2x81x128xf32, #tpu.memory_space<vmem>>, vector<1x81x128xf32>
    %29 = vector.shape_cast %28 : vector<1x81x128xf32> to vector<81x128xf32>
    %cst_20 = arith.constant dense<0.000000e+00> : vector<8x128xf32>
    %30 = tpu.matmul %27, %29, %cst_20 {dimension_numbers = #tpu.dot_dimension_numbers<[1], [0], [0], [1], [0, 0, 1, 1], [], []>} : vector<8x81xf32>, vector<81x128xf32>, vector<8x128xf32> -> vector<8x128xf32>
    %c0_21 = arith.constant 0 : index
    %c0_22 = arith.constant 0 : index
    %c0_23 = arith.constant 0 : index
    %31 = vector.load %arg1[%c0_21, %c0_22, %c0_23] : memref<4x8x81xf32, #tpu.memory_space<vmem>>, vector<1x8x81xf32>
    %32 = vector.shape_cast %31 : vector<1x8x81xf32> to vector<8x81xf32>
    %c1_24 = arith.constant 1 : index
    %c0_25 = arith.constant 0 : index
    %33 = memref.load %arg2[%c1_24, %c0_25] : memref<2x4xf32, #tpu.memory_space<smem>>
    %34 = vector.broadcast %33 : f32 to vector<8x81xf32>
    %35 = arith.mulf %32, %34 : vector<8x81xf32>
    %c1_26 = arith.constant 1 : index
    %c0_27 = arith.constant 0 : index
    %c0_28 = arith.constant 0 : index
    %36 = vector.load %arg1[%c1_26, %c0_27, %c0_28] : memref<4x8x81xf32, #tpu.memory_space<vmem>>, vector<1x8x81xf32>
    %37 = vector.shape_cast %36 : vector<1x8x81xf32> to vector<8x81xf32>
    %c1_29 = arith.constant 1 : index
    %c1_30 = arith.constant 1 : index
    %38 = memref.load %arg2[%c1_29, %c1_30] : memref<2x4xf32, #tpu.memory_space<smem>>
    %39 = vector.broadcast %38 : f32 to vector<8x81xf32>
    %40 = arith.mulf %37, %39 : vector<8x81xf32>
    %41 = arith.addf %35, %40 : vector<8x81xf32>
    %c2_31 = arith.constant 2 : index
    %c0_32 = arith.constant 0 : index
    %c0_33 = arith.constant 0 : index
    %42 = vector.load %arg1[%c2_31, %c0_32, %c0_33] : memref<4x8x81xf32, #tpu.memory_space<vmem>>, vector<1x8x81xf32>
    %43 = vector.shape_cast %42 : vector<1x8x81xf32> to vector<8x81xf32>
    %c1_34 = arith.constant 1 : index
    %c2_35 = arith.constant 2 : index
    %44 = memref.load %arg2[%c1_34, %c2_35] : memref<2x4xf32, #tpu.memory_space<smem>>
    %45 = vector.broadcast %44 : f32 to vector<8x81xf32>
    %46 = arith.mulf %43, %45 : vector<8x81xf32>
    %47 = arith.addf %41, %46 : vector<8x81xf32>
    %c3_36 = arith.constant 3 : index
    %c0_37 = arith.constant 0 : index
    %c0_38 = arith.constant 0 : index
    %48 = vector.load %arg1[%c3_36, %c0_37, %c0_38] : memref<4x8x81xf32, #tpu.memory_space<vmem>>, vector<1x8x81xf32>
    %49 = vector.shape_cast %48 : vector<1x8x81xf32> to vector<8x81xf32>
    %c1_39 = arith.constant 1 : index
    %c3_40 = arith.constant 3 : index
    %50 = memref.load %arg2[%c1_39, %c3_40] : memref<2x4xf32, #tpu.memory_space<smem>>
    %51 = vector.broadcast %50 : f32 to vector<8x81xf32>
    %52 = arith.mulf %49, %51 : vector<8x81xf32>
    %53 = arith.addf %47, %52 : vector<8x81xf32>
    %c1_41 = arith.constant 1 : index
    %54 = memref.load %arg3[%c1_41] : memref<2xf32, #tpu.memory_space<smem>>
    %55 = vector.broadcast %54 : f32 to vector<8x81xf32>
    %56 = arith.addf %53, %55 : vector<8x81xf32>
    %cst_42 = arith.constant 0.000000e+00 : f32
    %57 = vector.broadcast %cst_42 : f32 to vector<8x81xf32>
    %58 = arith.maximumf %56, %57 : vector<8x81xf32>
    %c1_43 = arith.constant 1 : index
    %c0_44 = arith.constant 0 : index
    %c0_45 = arith.constant 0 : index
    %59 = vector.load %arg4[%c1_43, %c0_44, %c0_45] : memref<2x81x128xf32, #tpu.memory_space<vmem>>, vector<1x81x128xf32>
    %60 = vector.shape_cast %59 : vector<1x81x128xf32> to vector<81x128xf32>
    %cst_46 = arith.constant dense<0.000000e+00> : vector<8x128xf32>
    %61 = tpu.matmul %58, %60, %cst_46 {dimension_numbers = #tpu.dot_dimension_numbers<[1], [0], [0], [1], [0, 0, 1, 1], [], []>} : vector<8x81xf32>, vector<81x128xf32>, vector<8x128xf32> -> vector<8x128xf32>
    %62 = arith.addf %30, %61 : vector<8x128xf32>
    %c0_47 = arith.constant 0 : index
    %c0_48 = arith.constant 0 : index
    %63 = vector.load %arg5[%c0_47, %c0_48] : memref<1x128xf32, #tpu.memory_space<vmem>>, vector<1x128xf32>
    %64 = vector.broadcast %63 : vector<1x128xf32> to vector<8x128xf32>
    %65 = arith.addf %62, %64 : vector<8x128xf32>
    %c0_49 = arith.constant 0 : index
    %c0_50 = arith.constant 0 : index
    %66 = vector.load %arg6[%c0_49, %c0_50] : memref<8x128xf32, #tpu.memory_space<vmem>>, vector<8x128xf32>
    tpu.vector_store %arg6[%c0_49, %c0_50], %65 {strides = array<i32>} : memref<8x128xf32, #tpu.memory_space<vmem>>, vector<8x128xf32>,
    return
  }
  func.func @transform_0(%arg0: i32) -> (i32, i32, i32) {
    %c0_i32 = arith.constant 0 : i32
    %c0_i32_0 = arith.constant 0 : i32
    %c0_i32_1 = arith.constant 0 : i32
    return %c0_i32, %arg0, %c0_i32_0 : i32, i32, i32
  }
  func.func @transform_1(%arg0: i32) -> (i32, i32) {
    %c0_i32 = arith.constant 0 : i32
    %c0_i32_0 = arith.constant 0 : i32
    %c0_i32_1 = arith.constant 0 : i32
    return %c0_i32, %c0_i32_0 : i32, i32
  }
  func.func @transform_2(%arg0: i32) -> i32 {
    %c0_i32 = arith.constant 0 : i32
    %c0_i32_0 = arith.constant 0 : i32
    return %c0_i32 : i32
  }
  func.func @transform_3(%arg0: i32) -> (i32, i32, i32) {
    %c0_i32 = arith.constant 0 : i32
    %c0_i32_0 = arith.constant 0 : i32
    %c0_i32_1 = arith.constant 0 : i32
    %c0_i32_2 = arith.constant 0 : i32
    return %c0_i32, %c0_i32_0, %c0_i32_1 : i32, i32, i32
  }
  func.func @transform_4(%arg0: i32) -> (i32, i32) {
    %c0_i32 = arith.constant 0 : i32
    %c0_i32_0 = arith.constant 0 : i32
    %c0_i32_1 = arith.constant 0 : i32
    return %c0_i32, %c0_i32_0 : i32, i32
  }
  func.func @transform_5(%arg0: i32) -> (i32, i32) {
    %c0_i32 = arith.constant 0 : i32
    %c0_i32_0 = arith.constant 0 : i32
    return %arg0, %c0_i32 : i32, i32
  }
}

</mosaic_0001>

<llo_original>
// kernel: tpu_custom_call.1
$region0: #{tpu_custom_call.1}
  #allocation0 [shape = 'u32[]', space=smem, size = 0x4, offset = 0x4, fixed_abs, tag = 'smem constant byte address 0x4 - core index']
  #allocation1 [shape = 'u32[144,128]{1,0:T(1,128)}', space=vmem, size = 0x12000, scoped, tag = 'internal scratch']
  %s0 = inlined_call_operand.vmem [shape: f32[4,8,81], index: 0, kind: input, shape index: {}]
  %s1 = inlined_call_operand.vmem [shape: f32[2,4], index: 1, kind: input, shape index: {}]
  %s2 = inlined_call_operand.vmem [shape: f32[2], index: 2, kind: input, shape index: {}]
  %s3 = inlined_call_operand.vmem [shape: f32[2,81,128], index: 3, kind: input, shape index: {}]
  %s4 = inlined_call_operand.vmem [shape: f32[1,128], index: 4, kind: input, shape index: {}]
  %s5 = inlined_call_operand.hbm [shape: f32[8,128], index: 5, kind: output, shape index: {}]
  %s6 = sld [smem:[#allocation0]]
  $region38: #{tpu_custom_call.1} parent=0
    _
  %s8 = ssub.s32 1, %s6
  %s9 = scalar_select 0, %s8, %s6
  $region1: #{tpu_custom_call.1} parent=0
    #allocation2 [shape = 'u8[1024]{0}', space=smem, size = 0x400, scoped, tag = 'input window, operand 1, single buffered']
    #allocation3 [shape = 's32[1]{0}', space=sflag, size = 0x4, scoped, tag = 'scoped memory for tpu_custom_call.1']
    #allocation4 [shape = 's32[1]{0}', space=sflag, size = 0x4, scoped, tag = 'scoped memory for tpu_custom_call.1']
    #allocation5 [shape = 'u8[512]{0}', space=smem, size = 0x200, scoped, tag = 'input window, operand 2, single buffered']
    #allocation6 [shape = 's32[1]{0}', space=sflag, size = 0x4, scoped, tag = 'scoped memory for tpu_custom_call.1']
    #allocation7 [shape = 'u8[4096]{0}', space=vmem, size = 0x1000, scoped, tag = 'output window, operand 0, single buffered']
    %10 = vsyncpa [#allocation4], 0
    %11 = vsyncpa [#allocation6], 0
    %12 = vsyncpa [#allocation3], 0
    // Predicated region
    $region2: #{tpu_custom_call.1} parent=1 // pred_check
      _
    $region3: #{tpu_custom_call.1} parent=1 // pred_check_branch
      %14 = sbr.rel (0) target = $region5
    $region4: #{tpu_custom_call.1} parent=1 // pred_region
      _
    $region5: #{tpu_custom_call.1} parent=1 // pred_fallthru
      _
    // Predicated region
    $region6: #{tpu_custom_call.1} parent=1 // pred_check
      _
    $region7: #{tpu_custom_call.1} parent=1 // pred_check_branch
      %16 = sbr.rel (0) target = $region9
    $region8: #{tpu_custom_call.1} parent=1 // pred_region
      %s18 = ssub.s32 32, 32
      %19 = vsyncadd [#allocation4], %s18
      %s21 = sshll.u32 %s1, 4
      %s22 = int_to_ptr.vmem [resolvable:$true] %s21
      %24 = dma.vmem_to_smem %s22, 32, [#allocation2], [#allocation4]
    $region9: #{tpu_custom_call.1} parent=1 // pred_fallthru
      _
    // Predicated region
    $region10: #{tpu_custom_call.1} parent=1 // pred_check
      _
    $region11: #{tpu_custom_call.1} parent=1 // pred_check_branch
      %26 = sbr.rel (0) target = $region13
    $region12: #{tpu_custom_call.1} parent=1 // pred_region
      %s28 = ssub.s32 16, 16
      %29 = vsyncadd [#allocation6], %s28
      %s31 = sshll.u32 %s2, 4
      %s32 = int_to_ptr.vmem [resolvable:$true] %s31
      %34 = dma.vmem_to_smem %s32, 16, [#allocation5], [#allocation6]
    $region13: #{tpu_custom_call.1} parent=1 // pred_fallthru
      _
    // Predicated region
    $region14: #{tpu_custom_call.1} parent=1 // pred_check
      _
    $region15: #{tpu_custom_call.1} parent=1 // pred_check_branch
      %36 = sbr.rel (0) target = $region17
    $region16: #{tpu_custom_call.1} parent=1 // pred_region
      _
    $region17: #{tpu_custom_call.1} parent=1 // pred_fallthru
      _
    // Predicated region
    $region18: #{tpu_custom_call.1} parent=1 // pred_check
      _
    $region19: #{tpu_custom_call.1} parent=1 // pred_check_branch
      %38 = sbr.rel (0) target = $region21
    $region20: #{tpu_custom_call.1} parent=1 // pred_region
      _
    $region21: #{tpu_custom_call.1} parent=1 // pred_fallthru
      _
    // Predicated region
    $region22: #{tpu_custom_call.1} parent=1 // pred_check
      _
    $region23: #{tpu_custom_call.1} parent=1 // pred_check_branch
      %40 = sbr.rel (0) target = $region25
    $region24: #{tpu_custom_call.1} parent=1 // pred_region
      %41 = dma.done [#allocation4], 32
    $region25: #{tpu_custom_call.1} parent=1 // pred_fallthru
      _
    // Predicated region
    $region26: #{tpu_custom_call.1} parent=1 // pred_check
      _
    $region27: #{tpu_custom_call.1} parent=1 // pred_check_branch
      %43 = sbr.rel (0) target = $region29
    $region28: #{tpu_custom_call.1} parent=1 // pred_region
      %44 = dma.done [#allocation6], 16
    $region29: #{tpu_custom_call.1} parent=1 // pred_fallthru
      _
    %45 = sfence
    %v46 = vld [vmem:[%s0] sm:$0xff]
    %s47 = sld [smem:[#allocation2]]
    %v48 = vstv %s47
    %v49 = vmul.f32 %v46, %v48
    %s50 = scalar_lea.vmem %s0, 8
    %v51 = vld [vmem:[%s50] sm:$0xff]
    %s52 = sld [smem:[#allocation2 + $0x1]]
    %v53 = vstv %s52
    %v54 = vmul.f32 %v51, %v53
    %v55 = vadd.f32 %v49, %v54
    %s56 = scalar_lea.vmem %s0, 16
    %v57 = vld [vmem:[%s56] sm:$0xff]
    %s58 = sld [smem:[#allocation2 + $0x2]]
    %v59 = vstv %s58
    %v60 = vmul.f32 %v57, %v59
    %v61 = vadd.f32 %v55, %v60
    %s62 = scalar_lea.vmem %s0, 24
    %v63 = vld [vmem:[%s62] sm:$0xff]
    %s64 = sld [smem:[#allocation2 + $0x3]]
    %v65 = vstv %s64
    %v66 = vmul.f32 %v63, %v65
    %v67 = vadd.f32 %v61, %v66
    %s68 = sld [smem:[#allocation5]]
    %v69 = vstv %s68
    %v70 = vadd.f32 %v67, %v69
    %v71 = vmax.f32 %v70, 0.0
    %v72 = vld [vmem:[%s3] sm:$0xff]
    %v73 = vld [vmem:[%s3 + $0x8] sm:$0xff]
    %v74 = vld [vmem:[%s3 + $0x10] sm:$0xff]
    %v75 = vld [vmem:[%s3 + $0x18] sm:$0xff]
    %v76 = vld [vmem:[%s3 + $0x20] sm:$0xff]
    %v77 = vld [vmem:[%s3 + $0x28] sm:$0xff]
    %v78 = vld [vmem:[%s3 + $0x30] sm:$0xff]
    %v79 = vld [vmem:[%s3 + $0x38] sm:$0xff]
    %v80 = vld [vmem:[%s3 + $0x40] sm:$0xff]
    %v81 = vld [vmem:[%s3 + $0x48] sm:$0xff]
    %v82 = vld [vmem:[%s3 + $0x50] sm:$0x1]
    %s83 = sld [smem:[#allocation2 + $0x80]]
    %v84 = vstv %s83
    %v85 = vmul.f32 %v46, %v84
    %s86 = sld [smem:[#allocation2 + $0x81]]
    %v87 = vstv %s86
    %v88 = vmul.f32 %v51, %v87
    %v89 = vadd.f32 %v85, %v88
    %s90 = sld [smem:[#allocation2 + $0x82]]
    %v91 = vstv %s90
    %v92 = vmul.f32 %v57, %v91
    %v93 = vadd.f32 %v89, %v92
    %s94 = sld [smem:[#allocation2 + $0x83]]
    %v95 = vstv %s94
    %v96 = vmul.f32 %v63, %v95
    %v97 = vadd.f32 %v93, %v96
    %s98 = sld [smem:[#allocation5 + $0x1]]
    %v99 = vstv %s98
    %v100 = vadd.f32 %v97, %v99
    %v101 = vmax.f32 %v100, 0.0
    %s102 = scalar_lea.vmem %s3, 88
    %v103 = vld [vmem:[%s102] sm:$0xff]
    %v104 = vld [vmem:[%s102 + $0x8] sm:$0xff]
    %v105 = vld [vmem:[%s102 + $0x10] sm:$0xff]
    %v106 = vld [vmem:[%s102 + $0x18] sm:$0xff]
    %v107 = vld [vmem:[%s102 + $0x20] sm:$0xff]
    %v108 = vld [vmem:[%s102 + $0x28] sm:$0xff]
    %v109 = vld [vmem:[%s102 + $0x30] sm:$0xff]
    %v110 = vld [vmem:[%s102 + $0x38] sm:$0xff]
    %v111 = vld [vmem:[%s102 + $0x40] sm:$0xff]
    %v112 = vld [vmem:[%s102 + $0x48] sm:$0xff]
    %v113 = vld [vmem:[%s102 + $0x50] sm:$0x1]
    %vm114 = vcmask 662528
    %v116 = vsel %vm114, %v101, 0
    %vm118 = vcmask 1040384
    %v120 = vsel %vm118, %v113, 0
    %122 = vmatprep.subr.mxu0 0.0
    %123 = vmatpush1.msra.mxu0 0.0
    %124 = vmatprep.subr.mxu0 0.0
    %125 = vmatpush1.msra.mxu0 0.0
    %126 = vmatprep.subr.mxu0 0.0
    %127 = vmatpush1.msra.mxu0 0.0
    %128 = vmatprep.subr.mxu0 0.0
    %129 = vmatpush1.msra.mxu0 0.0
    %130 = vmatprep.subr.mxu0 0.0
    %131 = vmatpush1.msra.mxu0 0.0
    %132 = vmatprep.subr.mxu0 0.0
    %133 = vmatpush1.msra.mxu0 %v120
    %134 = vmatprep.subr.mxu0 0.0
    %135 = vmatpush1.msra.mxu0 %v112
    %136 = vmatprep.subr.mxu0 0.0
    %137 = vmatpush1.msra.mxu0 %v111
    %138 = vmatprep.subr.mxu0 0.0
    %139 = vmatpush1.msra.mxu0 %v110
    %140 = vmatprep.subr.mxu0 0.0
    %141 = vmatpush1.msra.mxu0 %v109
    %142 = vmatprep.subr.mxu0 0.0
    %143 = vmatpush1.msra.mxu0 %v108
    %144 = vmatprep.subr.mxu0 0.0
    %145 = vmatpush1.msra.mxu0 %v107
    %146 = vmatprep.subr.mxu0 0.0
    %147 = vmatpush1.msra.mxu0 %v106
    %148 = vmatprep.subr.mxu0 0.0
    %149 = vmatpush1.msra.mxu0 %v105
    %150 = vmatprep.subr.mxu0 0.0
    %151 = vmatpush1.msra.mxu0 %v104
    %152 = vmatprep.subr.mxu0 0.0
    %153 = vmatpush1.msra.mxu0 %v103
    %154 = vmatprep.subr.mxu0 0.0
    %155 = vmatpush2.msra.mxu0 0.0
    %156 = vmatprep.subr.mxu0 0.0
    %157 = vmatpush2.msra.mxu0 0.0
    %158 = vmatprep.subr.mxu0 0.0
    %159 = vmatpush2.msra.mxu0 0.0
    %160 = vmatprep.subr.mxu0 0.0
    %161 = vmatpush2.msra.mxu0 0.0
    %162 = vmatprep.subr.mxu0 0.0
    %163 = vmatpush2.msra.mxu0 0.0
    %164 = vmatprep.subr.mxu0 0.0
    %165 = vmatpush2.msra.mxu0 0.0
    %166 = vmatprep.subr.mxu0 0.0
    %167 = vmatpush2.msra.mxu0 0.0
    %168 = vmatprep.subr.mxu0 0.0
    %169 = vmatpush2.msra.mxu0 0.0
    %170 = vmatprep.subr.mxu0 0.0
    %171 = vmatpush2.msra.mxu0 0.0
    %172 = vmatprep.subr.mxu0 0.0
    %173 = vmatpush2.msra.mxu0 0.0
    %174 = vmatprep.subr.mxu0 0.0
    %175 = vmatpush2.msra.mxu0 0.0
    %176 = vmatprep.subr.mxu0 0.0
    %177 = vmatpush2.msra.mxu0 0.0
    %178 = vmatprep.subr.mxu0 0.0
    %179 = vmatpush2.msra.mxu0 0.0
    %180 = vmatprep.subr.mxu0 0.0
    %181 = vmatpush2.msra.mxu0 0.0
    %182 = vmatprep.subr.mxu0 0.0
    %183 = vmatpush2.msra.mxu0 0.0
    %184 = vmatprep.subr.mxu0 0.0
    %185 = vmatpush2.msra.mxu0 0.0
    %186 = vmatprep.mubr.f32.mxu0 0.0
    %187 = vmatmul.mubr.f32.gmra.mxu0 %v116
    %v188 = vpop.f32.mrf.mxu0
    %v189 = vadd.f32 0.0, %v188
    %v190 = vpop.f32.mrf.mxu0
    %191 = vdwg.mxu0
    %v193 = vsel %vm114, %v71, 0
    %v196 = vsel %vm118, %v82, 0
    %198 = vmatprep.subr.mxu0 0.0
    %199 = vmatpush1.msra.mxu0 0.0
    %200 = vmatprep.subr.mxu0 0.0
    %201 = vmatpush1.msra.mxu0 0.0
    %202 = vmatprep.subr.mxu0 0.0
    %203 = vmatpush1.msra.mxu0 0.0
    %204 = vmatprep.subr.mxu0 0.0
    %205 = vmatpush1.msra.mxu0 0.0
    %206 = vmatprep.subr.mxu0 0.0
    %207 = vmatpush1.msra.mxu0 0.0
    %208 = vmatprep.subr.mxu0 0.0
    %209 = vmatpush1.msra.mxu0 %v196
    %210 = vmatprep.subr.mxu0 0.0
    %211 = vmatpush1.msra.mxu0 %v81
    %212 = vmatprep.subr.mxu0 0.0
    %213 = vmatpush1.msra.mxu0 %v80
    %214 = vmatprep.subr.mxu0 0.0
    %215 = vmatpush1.msra.mxu0 %v79
    %216 = vmatprep.subr.mxu0 0.0
    %217 = vmatpush1.msra.mxu0 %v78
    %218 = vmatprep.subr.mxu0 0.0
    %219 = vmatpush1.msra.mxu0 %v77
    %220 = vmatprep.subr.mxu0 0.0
    %221 = vmatpush1.msra.mxu0 %v76
    %222 = vmatprep.subr.mxu0 0.0
    %223 = vmatpush1.msra.mxu0 %v75
    %224 = vmatprep.subr.mxu0 0.0
    %225 = vmatpush1.msra.mxu0 %v74
    %226 = vmatprep.subr.mxu0 0.0
    %227 = vmatpush1.msra.mxu0 %v73
    %228 = vmatprep.subr.mxu0 0.0
    %229 = vmatpush1.msra.mxu0 %v72
    %230 = vmatprep.subr.mxu0 0.0
    %231 = vmatpush2.msra.mxu0 0.0
    %232 = vmatprep.subr.mxu0 0.0
    %233 = vmatpush2.msra.mxu0 0.0
    %234 = vmatprep.subr.mxu0 0.0
    %235 = vmatpush2.msra.mxu0 0.0
    %236 = vmatprep.subr.mxu0 0.0
    %237 = vmatpush2.msra.mxu0 0.0
    %238 = vmatprep.subr.mxu0 0.0
    %239 = vmatpush2.msra.mxu0 0.0
    %240 = vmatprep.subr.mxu0 0.0
    %241 = vmatpush2.msra.mxu0 0.0
    %242 = vmatprep.subr.mxu0 0.0
    %243 = vmatpush2.msra.mxu0 0.0
    %244 = vmatprep.subr.mxu0 0.0
    %245 = vmatpush2.msra.mxu0 0.0
    %246 = vmatprep.subr.mxu0 0.0
    %247 = vmatpush2.msra.mxu0 0.0
    %248 = vmatprep.subr.mxu0 0.0
    %249 = vmatpush2.msra.mxu0 0.0
    %250 = vmatprep.subr.mxu0 0.0
    %251 = vmatpush2.msra.mxu0 0.0
    %252 = vmatprep.subr.mxu0 0.0
    %253 = vmatpush2.msra.mxu0 0.0
    %254 = vmatprep.subr.mxu0 0.0
    %255 = vmatpush2.msra.mxu0 0.0
    %256 = vmatprep.subr.mxu0 0.0
    %257 = vmatpush2.msra.mxu0 0.0
    %258 = vmatprep.subr.mxu0 0.0
    %259 = vmatpush2.msra.mxu0 0.0
    %260 = vmatprep.subr.mxu0 0.0
    %261 = vmatpush2.msra.mxu0 0.0
    %262 = vmatprep.mubr.f32.mxu0 0.0
    %263 = vmatmul.mubr.f32.gmra.mxu0 %v193
    %v264 = vpop.f32.mrf.mxu0
    %v265 = vadd.f32 %v189, %v264
    %v266 = vpop.f32.mrf.mxu0
    %267 = vdwg.mxu0
    %v268 = vld [vmem:[%s4] sm:$0x1]
    %v270 = vlaneseq
    %v271 = vshrl.u32 %v270, 7
    %v272 = vsub.s32 0, %v271
    %v273 = vrot.slane %v268, %v272
    %v275 = vadd.f32 %v265, %v273
    %276 = vst [vmem:[#allocation7] sm:$0xff] %v275
    // Predicated region
    $region30: #{tpu_custom_call.1} parent=1 // pred_check
      _
    $region31: #{tpu_custom_call.1} parent=1 // pred_check_branch
      %278 = sbr.rel (0) target = $region33
    $region32: #{tpu_custom_call.1} parent=1 // pred_region
      %s280 = ssub.s32 128, 128
      %281 = vsyncadd [#allocation3], %s280
      %s283 = sshll.u32 [#allocation7], 4
      %s284 = int_to_ptr.vmem [resolvable:$true] %s283
      %286 = dma.vmem_to_hbm [thread:$0]  %s284, 128, %s5, [#allocation3]
    $region33: #{tpu_custom_call.1} parent=1 // pred_fallthru
      _
    // Predicated region
    $region34: #{tpu_custom_call.1} parent=1 // pred_check
      _
    $region35: #{tpu_custom_call.1} parent=1 // pred_check_branch
      %288 = sbr.rel (0) target = $region37
    $region36: #{tpu_custom_call.1} parent=1 // pred_region
      %289 = dma.done [#allocation3], 128
    $region37: #{tpu_custom_call.1} parent=1 // pred_fallthru
      _
    %290 = vsyncpa [#allocation3], 1
    %291 = vsyncpa [#allocation4], 1
    %292 = vsyncpa [#allocation6], 1

</llo_original>
